<compile_context>
chip_gen: v6e
topology: v6e:2x2x1
jax: 0.10.0
libtpu: 0.0.40
codegen_flags: <defaults>
</compile_context>

<pallas_src>
import functools

import numpy as np
import jax
import jax.numpy as jnp
from jax.experimental import pallas as pl
from jax.experimental.pallas import tpu as pltpu


def fire_kernel(W, x_ref, wsq_ref, bsq_ref, wexp_ref, mask_ref, o_ref, win_ref):
    """One grid step: NB images flattened onto the lane axis (L = NB*H*W).

    x_ref:    (Cin, L)          input slab
    wsq_ref:  (Csq, Cin)        squeeze 1x1 weights
    bsq_ref:  (Csq, 1)          squeeze bias
    wexp_ref: (Cout, 9*Csq+1)   fused expand weights (last column = bias)
    mask_ref: (9, L)            precomputed 3x3 boundary masks (one row / tap)
    o_ref:    (Cout, L)         fused [e1; e3] output slab
    win_ref:  (9*Csq+1, L)      VMEM scratch: 9 shifted taps + ones row
    """
    L = x_ref.shape[1]
    Csq = wsq_ref.shape[0]

    # ---- squeeze: 1x1 conv + ReLU == (Csq, Cin) @ (Cin, L) ----
    s = jnp.dot(wsq_ref[...], x_ref[...], preferred_element_type=jnp.float32)
    s = jnp.maximum(s + bsq_ref[...], 0.0)                     # (Csq, L)

    # ---- 9 shifted 3x3 taps (lane rolls * precomputed masks) into scratch ----
    tap = 0
    for kh in range(3):
        for kw in range(3):
            dh, dw = kh - 1, kw - 1
            if dh == 0 and dw == 0:
                win_ref[pl.ds(tap * Csq, Csq), :] = s          # center tap
            else:
                off = dh * W + dw
                shifted = pltpu.roll(s, shift=(-off) % L, axis=1)
                win_ref[pl.ds(tap * Csq, Csq), :] = (
                    shifted * mask_ref[pl.ds(tap, 1), :])
            tap += 1
    # all-ones row folds the expand bias into the matmul below
    win_ref[pl.ds(9 * Csq, 1), :] = jnp.ones((1, L), jnp.float32)

    # ---- fused expand1x1 + expand3x3 + bias + concat: one K=9*Csq+1 matmul ----
    out = jnp.dot(wexp_ref[...], win_ref[...], preferred_element_type=jnp.float32)
    o_ref[...] = jnp.maximum(out, 0.0)                         # (Cout, L)


def _boundary_masks(H, W, nb):
    """(9, nb*H*W) f32: 1 where the (dh, dw) neighbor lies inside the image."""
    hh, ww = np.meshgrid(np.arange(H), np.arange(W), indexing="ij")
    hh = hh.reshape(-1)
    ww = ww.reshape(-1)
    rows = []
    for kh in range(3):
        for kw in range(3):
            dh, dw = kh - 1, kw - 1
            valid = ((hh + dh >= 0) & (hh + dh < H) &
                     (ww + dw >= 0) & (ww + dw < W))
            rows.append(valid.astype(np.float32))
    return np.tile(np.stack(rows, axis=0), (1, nb))


def _pick_batch_block(N, HW, max_lanes=32768):
    """Largest NB dividing N with NB*HW <= max_lanes and >=2 grid steps (v7x)."""
    min_steps = 2 if N >= 2 else 1
    best = 1
    for nb in range(1, N + 1):
        if N % nb or nb * HW > max_lanes or N // nb < min_steps:
            continue
        best = nb
    return best


@jax.jit
def fire_forward(x_nchw, wsq, bsq, we1, be1, we3, be3):
    """Pallas Fire forward.

    x_nchw: (N, Cin, H, W) f32
    wsq: (Csq, Cin), bsq: (Csq,)          -- squeeze 1x1 (PyTorch OI layout)
    we1: (Ce1, Csq), be1: (Ce1,)          -- expand1x1
    we3: (Ce3, Csq, 3, 3), be3: (Ce3,)    -- expand3x3 (PyTorch OIHW)
    returns (N, Ce1+Ce3, H, W) f32
    """
    N, Cin, H, W = x_nchw.shape
    HW = H * W
    Csq = wsq.shape[0]
    Ce1, Ce3 = we1.shape[0], we3.shape[0]
    Cout = Ce1 + Ce3
    K = 9 * Csq + 1

    NB = _pick_batch_block(N, HW)
    if (NB * HW) % 128 != 0:
        NB = N            # lane block must be 128-aligned or cover the full axis
    L = NB * HW
    steps = N // NB

    # Batch-on-lanes layout (pure layout plumbing).
    x_flat = jnp.transpose(x_nchw.reshape(N, Cin, HW), (1, 0, 2)).reshape(
        Cin, N * HW)

    # Fused expand weight: columns ordered tap-major then channel, + bias col.
    we3_flat = jnp.transpose(we3, (0, 2, 3, 1)).reshape(Ce3, 9 * Csq)
    we1_flat = jnp.pad(we1, ((0, 0), (4 * Csq, 4 * Csq)))      # center tap kh=kw=1
    wexp = jnp.concatenate([we1_flat, we3_flat], axis=0)       # (Cout, 9*Csq)
    bexp = jnp.concatenate([be1, be3])[:, None]                # (Cout, 1)
    wexp = jnp.concatenate([wexp, bexp], axis=1)               # (Cout, K)
    bsq_c = bsq[:, None]                                       # (Csq, 1)

    # Compile-time constant boundary masks (no in-kernel mask rebuild).
    mask = jnp.asarray(_boundary_masks(H, W, NB))               # (9, L)

    out_flat = pl.pallas_call(
        functools.partial(fire_kernel, W),
        out_shape=jax.ShapeDtypeStruct((Cout, N * HW), jnp.float32),
        grid_spec=pltpu.PrefetchScalarGridSpec(
            num_scalar_prefetch=0,
            grid=(steps,),
            in_specs=[
                pl.BlockSpec((Cin, L), lambda n: (0, n)),
                pl.BlockSpec((Csq, Cin), lambda n: (0, 0)),
                pl.BlockSpec((Csq, 1), lambda n: (0, 0)),
                pl.BlockSpec((Cout, K), lambda n: (0, 0)),
                pl.BlockSpec((9, L), lambda n: (0, 0)),
            ],
            out_specs=pl.BlockSpec((Cout, L), lambda n: (0, n)),
            scratch_shapes=[pltpu.VMEM((K, L), jnp.float32)],
        ),
        compiler_params=pltpu.CompilerParams(
            dimension_semantics=("parallel",)),
    )(x_flat, wsq, bsq_c, wexp, mask)

    out = jnp.transpose(out_flat.reshape(Cout, N, HW), (1, 0, 2))
    return out.reshape(N, Cout, H, W)


def fire_reference(x, wsq, bsq, we1, be1, we3, be3):
    """Pure-JAX reference (NCHW / OIHW convs), exact f32."""
    dn = ('NCHW', 'OIHW', 'NCHW')
    prec = jax.lax.Precision.HIGHEST
    s = jax.lax.conv_general_dilated(x, wsq[:, :, None, None], (1, 1), 'VALID',
                                     dimension_numbers=dn, precision=prec)
    s = jnp.maximum(s + bsq[None, :, None, None], 0.0)
    e1 = jax.lax.conv_general_dilated(s, we1[:, :, None, None], (1, 1), 'VALID',
                                      dimension_numbers=dn, precision=prec)
    e1 = jnp.maximum(e1 + be1[None, :, None, None], 0.0)
    e3 = jax.lax.conv_general_dilated(s, we3, (1, 1), ((1, 1), (1, 1)),
                                      dimension_numbers=dn, precision=prec)
    e3 = jnp.maximum(e3 + be3[None, :, None, None], 0.0)
    return jnp.concatenate([e1, e3], axis=1)


if __name__ == "__main__":
    # Fire(inchn=4, sqzout_chn=8, exp1x1out_chn=8, exp3x3out_chn=8)
    inchn, sqz, e1c, e3c = 4, 8, 8, 8
    N, H, W = 2, 16, 16

    key = jax.random.PRNGKey(0)
    kx, k1, k2, k3, k4, k5, k6 = jax.random.split(key, 7)

    x = jax.random.normal(kx, (N, inchn, H, W), jnp.float32)

    # Deterministic synthetic parameters in PyTorch Conv2d layouts.
    w_sq = jax.random.normal(k1, (sqz, inchn), jnp.float32) * 0.2
    b_sq = jax.random.normal(k2, (sqz,), jnp.float32) * 0.1
    w_e1 = jax.random.normal(k3, (e1c, sqz), jnp.float32) * 0.2
    b_e1 = jax.random.normal(k4, (e1c,), jnp.float32) * 0.1
    w_e3 = jax.random.normal(k5, (e3c, sqz, 3, 3), jnp.float32) * 0.1
    b_e3 = jax.random.normal(k6, (e3c,), jnp.float32) * 0.1

    out = fire_forward(x, w_sq, b_sq, w_e1, b_e1, w_e3, b_e3)
    out = jax.block_until_ready(out)

    ref = fire_reference(x, w_sq, b_sq, w_e1, b_e1, w_e3, b_e3)
    assert out.shape == (N, e1c + e3c, H, W), out.shape
    max_err = float(jnp.max(jnp.abs(out - ref)))
    assert jnp.allclose(out, ref, rtol=1e-4, atol=1e-4), f"mismatch: {max_err}"

    print("KERNEL_OK")
</pallas_src>

<mosaic_0001>
module attributes {stable_mosaic.version = 11 : i64} {
  func.func @fire_kernel(%arg0: i32, %arg1: memref<4x256xf32, #tpu.memory_space<vmem>>, %arg2: memref<8x4xf32, #tpu.memory_space<vmem>>, %arg3: memref<8x1xf32, #tpu.memory_space<vmem>>, %arg4: memref<16x73xf32, #tpu.memory_space<vmem>>, %arg5: memref<9x256xf32, #tpu.memory_space<vmem>>, %arg6: memref<16x256xf32, #tpu.memory_space<vmem>>, %arg7: memref<73x256xf32, #tpu.memory_space<vmem>>) attributes {dimension_semantics = [#tpu.dimension_semantics<parallel>], iteration_bounds = array<i64: 2>, scalar_prefetch = 0 : i64, scratch_operands = 1 : i64, tpu.core_type = #tpu.core_type<tc>, window_params = [{transform_indices = @transform_0, window_bounds = array<i64: 4, 256>}, {pipeline_mode = #tpu.pipeline_mode<synchronous>, transform_indices = @transform_1, window_bounds = array<i64: 8, 4>}, {pipeline_mode = #tpu.pipeline_mode<synchronous>, transform_indices = @transform_2, window_bounds = array<i64: 8, 1>}, {pipeline_mode = #tpu.pipeline_mode<synchronous>, transform_indices = @transform_3, window_bounds = array<i64: 16, 73>}, {pipeline_mode = #tpu.pipeline_mode<synchronous>, transform_indices = @transform_4, window_bounds = array<i64: 9, 256>}, {transform_indices = @transform_5, window_bounds = array<i64: 16, 256>}]} {
    %c0 = arith.constant 0 : index
    %c0_0 = arith.constant 0 : index
    %0 = vector.load %arg2[%c0, %c0_0] : memref<8x4xf32, #tpu.memory_space<vmem>>, vector<8x4xf32>
    %c0_1 = arith.constant 0 : index
    %c0_2 = arith.constant 0 : index
    %1 = vector.load %arg1[%c0_1, %c0_2] : memref<4x256xf32, #tpu.memory_space<vmem>>, vector<4x256xf32>
    %cst = arith.constant dense<0.000000e+00> : vector<8x256xf32>
    %2 = tpu.matmul %0, %1, %cst {dimension_numbers = #tpu.dot_dimension_numbers<[1], [0], [0], [1], [0, 0, 1, 1], [], []>} : vector<8x4xf32>, vector<4x256xf32>, vector<8x256xf32> -> vector<8x256xf32>
    %c0_3 = arith.constant 0 : index
    %c0_4 = arith.constant 0 : index
    %3 = vector.load %arg3[%c0_3, %c0_4] : memref<8x1xf32, #tpu.memory_space<vmem>>, vector<8x1xf32>
    %4 = vector.broadcast %3 : vector<8x1xf32> to vector<8x256xf32>
    %5 = arith.addf %2, %4 : vector<8x256xf32>
    %cst_5 = arith.constant 0.000000e+00 : f32
    %6 = vector.broadcast %cst_5 : f32 to vector<8x256xf32>
    %7 = arith.maximumf %5, %6 : vector<8x256xf32>
    %c17_i32 = arith.constant 17 : i32
    %8 = tpu.dynamic_rotate %7 by %c17_i32 dim 1 : vector<8x256xf32>, i32 -> vector<8x256xf32>
    %c0_6 = arith.constant 0 : index
    %c0_7 = arith.constant 0 : index
    %9 = vector.load %arg5[%c0_6, %c0_7] : memref<9x256xf32, #tpu.memory_space<vmem>>, vector<1x256xf32>
    %10 = vector.broadcast %9 : vector<1x256xf32> to vector<8x256xf32>
    %11 = arith.mulf %8, %10 : vector<8x256xf32>
    %c0_8 = arith.constant 0 : index
    %c0_9 = arith.constant 0 : index
    %12 = vector.load %arg7[%c0_8, %c0_9] : memref<73x256xf32, #tpu.memory_space<vmem>>, vector<8x256xf32>
    tpu.vector_store %arg7[%c0_8, %c0_9], %11 {strides = array<i32>} : memref<73x256xf32, #tpu.memory_space<vmem>>, vector<8x256xf32>,
    %c16_i32 = arith.constant 16 : i32
    %13 = tpu.dynamic_rotate %7 by %c16_i32 dim 1 : vector<8x256xf32>, i32 -> vector<8x256xf32>
    %c1 = arith.constant 1 : index
    %c0_10 = arith.constant 0 : index
    %14 = vector.load %arg5[%c1, %c0_10] : memref<9x256xf32, #tpu.memory_space<vmem>>, vector<1x256xf32>
    %15 = vector.broadcast %14 : vector<1x256xf32> to vector<8x256xf32>
    %16 = arith.mulf %13, %15 : vector<8x256xf32>
    %c8 = arith.constant 8 : index
    %c0_11 = arith.constant 0 : index
    %17 = vector.load %arg7[%c8, %c0_11] : memref<73x256xf32, #tpu.memory_space<vmem>>, vector<8x256xf32>
    tpu.vector_store %arg7[%c8, %c0_11], %16 {strides = array<i32>} : memref<73x256xf32, #tpu.memory_space<vmem>>, vector<8x256xf32>,
    %c15_i32 = arith.constant 15 : i32
    %18 = tpu.dynamic_rotate %7 by %c15_i32 dim 1 : vector<8x256xf32>, i32 -> vector<8x256xf32>
    %c2 = arith.constant 2 : index
    %c0_12 = arith.constant 0 : index
    %19 = vector.load %arg5[%c2, %c0_12] : memref<9x256xf32, #tpu.memory_space<vmem>>, vector<1x256xf32>
    %20 = vector.broadcast %19 : vector<1x256xf32> to vector<8x256xf32>
    %21 = arith.mulf %18, %20 : vector<8x256xf32>
    %c16 = arith.constant 16 : index
    %c0_13 = arith.constant 0 : index
    %22 = vector.load %arg7[%c16, %c0_13] : memref<73x256xf32, #tpu.memory_space<vmem>>, vector<8x256xf32>
    tpu.vector_store %arg7[%c16, %c0_13], %21 {strides = array<i32>} : memref<73x256xf32, #tpu.memory_space<vmem>>, vector<8x256xf32>,
    %c1_i32 = arith.constant 1 : i32
    %23 = tpu.dynamic_rotate %7 by %c1_i32 dim 1 : vector<8x256xf32>, i32 -> vector<8x256xf32>
    %c3 = arith.constant 3 : index
    %c0_14 = arith.constant 0 : index
    %24 = vector.load %arg5[%c3, %c0_14] : memref<9x256xf32, #tpu.memory_space<vmem>>, vector<1x256xf32>
    %25 = vector.broadcast %24 : vector<1x256xf32> to vector<8x256xf32>
    %26 = arith.mulf %23, %25 : vector<8x256xf32>
    %c24 = arith.constant 24 : index
    %c0_15 = arith.constant 0 : index
    %27 = vector.load %arg7[%c24, %c0_15] : memref<73x256xf32, #tpu.memory_space<vmem>>, vector<8x256xf32>
    tpu.vector_store %arg7[%c24, %c0_15], %26 {strides = array<i32>} : memref<73x256xf32, #tpu.memory_space<vmem>>, vector<8x256xf32>,
    %c32 = arith.constant 32 : index
    %c0_16 = arith.constant 0 : index
    %28 = vector.load %arg7[%c32, %c0_16] : memref<73x256xf32, #tpu.memory_space<vmem>>, vector<8x256xf32>
    tpu.vector_store %arg7[%c32, %c0_16], %7 {strides = array<i32>} : memref<73x256xf32, #tpu.memory_space<vmem>>, vector<8x256xf32>,
    %c255_i32 = arith.constant 255 : i32
    %29 = tpu.dynamic_rotate %7 by %c255_i32 dim 1 : vector<8x256xf32>, i32 -> vector<8x256xf32>
    %c5 = arith.constant 5 : index
    %c0_17 = arith.constant 0 : index
    %30 = vector.load %arg5[%c5, %c0_17] : memref<9x256xf32, #tpu.memory_space<vmem>>, vector<1x256xf32>
    %31 = vector.broadcast %30 : vector<1x256xf32> to vector<8x256xf32>
    %32 = arith.mulf %29, %31 : vector<8x256xf32>
    %c40 = arith.constant 40 : index
    %c0_18 = arith.constant 0 : index
    %33 = vector.load %arg7[%c40, %c0_18] : memref<73x256xf32, #tpu.memory_space<vmem>>, vector<8x256xf32>
    tpu.vector_store %arg7[%c40, %c0_18], %32 {strides = array<i32>} : memref<73x256xf32, #tpu.memory_space<vmem>>, vector<8x256xf32>,
    %c241_i32 = arith.constant 241 : i32
    %34 = tpu.dynamic_rotate %7 by %c241_i32 dim 1 : vector<8x256xf32>, i32 -> vector<8x256xf32>
    %c6 = arith.constant 6 : index
    %c0_19 = arith.constant 0 : index
    %35 = vector.load %arg5[%c6, %c0_19] : memref<9x256xf32, #tpu.memory_space<vmem>>, vector<1x256xf32>
    %36 = vector.broadcast %35 : vector<1x256xf32> to vector<8x256xf32>
    %37 = arith.mulf %34, %36 : vector<8x256xf32>
    %c48 = arith.constant 48 : index
    %c0_20 = arith.constant 0 : index
    %38 = vector.load %arg7[%c48, %c0_20] : memref<73x256xf32, #tpu.memory_space<vmem>>, vector<8x256xf32>
    tpu.vector_store %arg7[%c48, %c0_20], %37 {strides = array<i32>} : memref<73x256xf32, #tpu.memory_space<vmem>>, vector<8x256xf32>,
    %c240_i32 = arith.constant 240 : i32
    %39 = tpu.dynamic_rotate %7 by %c240_i32 dim 1 : vector<8x256xf32>, i32 -> vector<8x256xf32>
    %c7 = arith.constant 7 : index
    %c0_21 = arith.constant 0 : index
    %40 = vector.load %arg5[%c7, %c0_21] : memref<9x256xf32, #tpu.memory_space<vmem>>, vector<1x256xf32>
    %41 = vector.broadcast %40 : vector<1x256xf32> to vector<8x256xf32>
    %42 = arith.mulf %39, %41 : vector<8x256xf32>
    %c56 = arith.constant 56 : index
    %c0_22 = arith.constant 0 : index
    %43 = vector.load %arg7[%c56, %c0_22] : memref<73x256xf32, #tpu.memory_space<vmem>>, vector<8x256xf32>
    tpu.vector_store %arg7[%c56, %c0_22], %42 {strides = array<i32>} : memref<73x256xf32, #tpu.memory_space<vmem>>, vector<8x256xf32>,
    %c239_i32 = arith.constant 239 : i32
    %44 = tpu.dynamic_rotate %7 by %c239_i32 dim 1 : vector<8x256xf32>, i32 -> vector<8x256xf32>
    %c8_23 = arith.constant 8 : index
    %c0_24 = arith.constant 0 : index
    %45 = vector.load %arg5[%c8_23, %c0_24] : memref<9x256xf32, #tpu.memory_space<vmem>>, vector<1x256xf32>
    %46 = vector.broadcast %45 : vector<1x256xf32> to vector<8x256xf32>
    %47 = arith.mulf %44, %46 : vector<8x256xf32>
    %c64 = arith.constant 64 : index
    %c0_25 = arith.constant 0 : index
    %48 = vector.load %arg7[%c64, %c0_25] : memref<73x256xf32, #tpu.memory_space<vmem>>, vector<8x256xf32>
    tpu.vector_store %arg7[%c64, %c0_25], %47 {strides = array<i32>} : memref<73x256xf32, #tpu.memory_space<vmem>>, vector<8x256xf32>,
    %cst_26 = arith.constant 1.000000e+00 : f32
    %49 = vector.broadcast %cst_26 : f32 to vector<1x256xf32>
    %c72 = arith.constant 72 : index
    %c0_27 = arith.constant 0 : index
    %50 = vector.load %arg7[%c72, %c0_27] : memref<73x256xf32, #tpu.memory_space<vmem>>, vector<1x256xf32>
    tpu.vector_store %arg7[%c72, %c0_27], %49 {strides = array<i32>} : memref<73x256xf32, #tpu.memory_space<vmem>>, vector<1x256xf32>,
    %c0_28 = arith.constant 0 : index
    %c0_29 = arith.constant 0 : index
    %51 = vector.load %arg4[%c0_28, %c0_29] : memref<16x73xf32, #tpu.memory_space<vmem>>, vector<16x73xf32>
    %c0_30 = arith.constant 0 : index
    %c0_31 = arith.constant 0 : index
    %52 = vector.load %arg7[%c0_30, %c0_31] : memref<73x256xf32, #tpu.memory_space<vmem>>, vector<73x256xf32>
    %cst_32 = arith.constant dense<0.000000e+00> : vector<16x256xf32>
    %53 = tpu.matmul %51, %52, %cst_32 {dimension_numbers = #tpu.dot_dimension_numbers<[1], [0], [0], [1], [0, 0, 1, 1], [], []>} : vector<16x73xf32>, vector<73x256xf32>, vector<16x256xf32> -> vector<16x256xf32>
    %cst_33 = arith.constant 0.000000e+00 : f32
    %54 = vector.broadcast %cst_33 : f32 to vector<16x256xf32>
    %55 = arith.maximumf %53, %54 : vector<16x256xf32>
    %c0_34 = arith.constant 0 : index
    %c0_35 = arith.constant 0 : index
    %56 = vector.load %arg6[%c0_34, %c0_35] : memref<16x256xf32, #tpu.memory_space<vmem>>, vector<16x256xf32>
    tpu.vector_store %arg6[%c0_34, %c0_35], %55 {strides = array<i32>} : memref<16x256xf32, #tpu.memory_space<vmem>>, vector<16x256xf32>,
    return
  }
  func.func @transform_0(%arg0: i32) -> (i32, i32) {
    %c0_i32 = arith.constant 0 : i32
    %c0_i32_0 = arith.constant 0 : i32
    return %c0_i32, %arg0 : i32, i32
  }
  func.func @transform_1(%arg0: i32) -> (i32, i32) {
    %c0_i32 = arith.constant 0 : i32
    %c0_i32_0 = arith.constant 0 : i32
    %c0_i32_1 = arith.constant 0 : i32
    return %c0_i32, %c0_i32_0 : i32, i32
  }
  func.func @transform_2(%arg0: i32) -> (i32, i32) {
    %c0_i32 = arith.constant 0 : i32
    %c0_i32_0 = arith.constant 0 : i32
    %c0_i32_1 = arith.constant 0 : i32
    return %c0_i32, %c0_i32_0 : i32, i32
  }
  func.func @transform_3(%arg0: i32) -> (i32, i32) {
    %c0_i32 = arith.constant 0 : i32
    %c0_i32_0 = arith.constant 0 : i32
    %c0_i32_1 = arith.constant 0 : i32
    return %c0_i32, %c0_i32_0 : i32, i32
  }
  func.func @transform_4(%arg0: i32) -> (i32, i32) {
    %c0_i32 = arith.constant 0 : i32
    %c0_i32_0 = arith.constant 0 : i32
    %c0_i32_1 = arith.constant 0 : i32
    return %c0_i32, %c0_i32_0 : i32, i32
  }
  func.func @transform_5(%arg0: i32) -> (i32, i32) {
    %c0_i32 = arith.constant 0 : i32
    %c0_i32_0 = arith.constant 0 : i32
    return %c0_i32, %arg0 : i32, i32
  }
}

</mosaic_0001>

<llo_original>
// kernel: fire_forward.1
$region0: #{fire_forward.1}
  #allocation0 [shape = 'u32[]', space=smem, size = 0x4, offset = 0x4, fixed_abs, tag = 'smem constant byte address 0x4 - core index']
  #allocation1 [shape = 'u32[144,128]{1,0:T(1,128)}', space=vmem, size = 0x12000, scoped, tag = 'internal scratch']
  #allocation2 [shape = 'f32[73,256]{1,0:T(8,128)}', space=vmem, size = 0x14000, scoped, tag = 'scratch operand']
  %s0 = inlined_call_operand.vmem [shape: f32[4,512], index: 0, kind: input, shape index: {}]
  %s1 = inlined_call_operand.vmem [shape: f32[8,4], index: 1, kind: input, shape index: {}]
  %s2 = inlined_call_operand.vmem [shape: f32[8,1], index: 2, kind: input, shape index: {}]
  %s3 = inlined_call_operand.vmem [shape: f32[16,73], index: 3, kind: input, shape index: {}]
  %s4 = inlined_call_operand.vmem [shape: f32[9,256], index: 4, kind: input, shape index: {}]
  %s5 = inlined_call_operand.vmem [shape: f32[16,512], index: 5, kind: output, shape index: {}]
  %s6 = sld [smem:[#allocation0]]
  $region72: #{fire_forward.1} parent=0
    _
  %s8 = ssub.s32 1, %s6
  %s9 = scalar_select 0, %s8, %s6
  $region1: #{fire_forward.1} parent=0
    #allocation3 [shape = 'u8[32768]{0}', space=vmem, size = 0x8000, scoped, tag = 'output window, operand 0']
    loop: start=0, step=1, limit=4
    $region2: #{fire_forward.1} parent=1 // loop_pre_header
      _
    $region3: #{fire_forward.1} parent=1 // loop_header
      %s11 = sphi 0, %s15
      %p12 = scmp.ge.s32.totalorder %s11, 4
      %s21 = sphi 0, %s23
      %s24 = sphi 0, %s21
      %s25 = sphi 0, %s24
      %s41 = sphi 0, %s25
      %s45 = sphi 0, %s45
      %s47 = sphi 0, %s45
      %s48 = sphi 0, %s47
      %s62 = sphi 0, %s48
      %s66 = sphi 0, %s66
      %s68 = sphi 0, %s66
      %s69 = sphi 0, %s68
      %s83 = sphi 0, %s69
      %s87 = sphi 0, %s87
      %s89 = sphi 0, %s87
      %s90 = sphi 0, %s89
      %s104 = sphi 0, %s90
      %s108 = sphi 0, %s108
      %s110 = sphi 0, %s108
      %s111 = sphi 0, %s110
      %s125 = sphi 0, %s111
      %s131 = sphi 0, %s133
      %s134 = sphi 0, %s131
      %s135 = sphi 0, %s134
      %s151 = sphi 0, %s135
    $region4: #{fire_forward.1} parent=1 // loop_header_branch
      %14 = sbr.rel (%p12) target = $region8
    $region5: #{fire_forward.1} parent=1 // loop_body
      %s16 = ssub.s32 %s11, 1
      %s17 = ssub.s32 %s11, 2
      %s18 = sadd.s32 %s11, 1
      %s19 = ssub.s32 %s11, %s18
      %p20 = scmp.eq.s32.totalorder %s19, 0
      %s22 = sadd.s32 %s21, 1
      %s23 = scalar_select %p20, %s21, %s22
      %p26 = pneg %p20
      %p27 = scmp.eq.s32.totalorder %s11, 1
      %p28 = por %p26, %p27
      %p29 = scmp.ne.s32.totalorder %s21, %s24
      %p30 = scmp.eq.s32.totalorder %s11, 0
      %p31 = por %p29, %p30
      %p32 = scmp.ne.s32.totalorder %s21, %s24
      %p33 = scmp.eq.s32.totalorder %s16, 1
      %p34 = por %p32, %p33
      %p35 = scmp.ne.s32.totalorder %s24, %s25
      %p36 = scmp.eq.s32.totalorder %s16, 0
      %p37 = por %p35, %p36
      %p38 = scmp.ne.s32.totalorder %s24, %s25
      %p39 = scmp.eq.s32.totalorder %s17, 1
      %p40 = por %p38, %p39
      %p42 = scmp.ne.s32.totalorder %s25, %s41
      %p43 = scmp.eq.s32.totalorder %s17, 0
      %p44 = por %p42, %p43
      %s46 = sadd.s32 %s45, 1
      %p49 = scmp.eq.s32.totalorder %s11, 1
      %p50 = scmp.ne.s32.totalorder %s45, %s47
      %p51 = scmp.eq.s32.totalorder %s11, 0
      %p52 = por %p50, %p51
      %p53 = scmp.ne.s32.totalorder %s45, %s47
      %p54 = scmp.eq.s32.totalorder %s16, 1
      %p55 = por %p53, %p54
      %p56 = scmp.ne.s32.totalorder %s47, %s48
      %p57 = scmp.eq.s32.totalorder %s16, 0
      %p58 = por %p56, %p57
      %p59 = scmp.ne.s32.totalorder %s47, %s48
      %p60 = scmp.eq.s32.totalorder %s17, 1
      %p61 = por %p59, %p60
      %p63 = scmp.ne.s32.totalorder %s48, %s62
      %p64 = scmp.eq.s32.totalorder %s17, 0
      %p65 = por %p63, %p64
      %s67 = sadd.s32 %s66, 1
      %p70 = scmp.eq.s32.totalorder %s11, 1
      %p71 = scmp.ne.s32.totalorder %s66, %s68
      %p72 = scmp.eq.s32.totalorder %s11, 0
      %p73 = por %p71, %p72
      %p74 = scmp.ne.s32.totalorder %s66, %s68
      %p75 = scmp.eq.s32.totalorder %s16, 1
      %p76 = por %p74, %p75
      %p77 = scmp.ne.s32.totalorder %s68, %s69
      %p78 = scmp.eq.s32.totalorder %s16, 0
      %p79 = por %p77, %p78
      %p80 = scmp.ne.s32.totalorder %s68, %s69
      %p81 = scmp.eq.s32.totalorder %s17, 1
      %p82 = por %p80, %p81
      %p84 = scmp.ne.s32.totalorder %s69, %s83
      %p85 = scmp.eq.s32.totalorder %s17, 0
      %p86 = por %p84, %p85
      %s88 = sadd.s32 %s87, 1
      %p91 = scmp.eq.s32.totalorder %s11, 1
      %p92 = scmp.ne.s32.totalorder %s87, %s89
      %p93 = scmp.eq.s32.totalorder %s11, 0
      %p94 = por %p92, %p93
      %p95 = scmp.ne.s32.totalorder %s87, %s89
      %p96 = scmp.eq.s32.totalorder %s16, 1
      %p97 = por %p95, %p96
      %p98 = scmp.ne.s32.totalorder %s89, %s90
      %p99 = scmp.eq.s32.totalorder %s16, 0
      %p100 = por %p98, %p99
      %p101 = scmp.ne.s32.totalorder %s89, %s90
      %p102 = scmp.eq.s32.totalorder %s17, 1
      %p103 = por %p101, %p102
      %p105 = scmp.ne.s32.totalorder %s90, %s104
      %p106 = scmp.eq.s32.totalorder %s17, 0
      %p107 = por %p105, %p106
      %s109 = sadd.s32 %s108, 1
      %p112 = scmp.eq.s32.totalorder %s11, 1
      %p113 = scmp.ne.s32.totalorder %s108, %s110
      %p114 = scmp.eq.s32.totalorder %s11, 0
      %p115 = por %p113, %p114
      %p116 = scmp.ne.s32.totalorder %s108, %s110
      %p117 = scmp.eq.s32.totalorder %s16, 1
      %p118 = por %p116, %p117
      %p119 = scmp.ne.s32.totalorder %s110, %s111
      %p120 = scmp.eq.s32.totalorder %s16, 0
      %p121 = por %p119, %p120
      %p122 = scmp.ne.s32.totalorder %s110, %s111
      %p123 = scmp.eq.s32.totalorder %s17, 1
      %p124 = por %p122, %p123
      %p126 = scmp.ne.s32.totalorder %s111, %s125
      %p127 = scmp.eq.s32.totalorder %s17, 0
      %p128 = por %p126, %p127
      %s129 = ssub.s32 %s11, %s18
      %p130 = scmp.eq.s32.totalorder %s129, 0
      %s132 = sadd.s32 %s131, 1
      %s133 = scalar_select %p130, %s131, %s132
      %p136 = pneg %p130
      %p137 = scmp.eq.s32.totalorder %s11, 1
      %p138 = por %p136, %p137
      %p139 = scmp.ne.s32.totalorder %s131, %s134
      %p140 = scmp.eq.s32.totalorder %s11, 0
      %p141 = por %p139, %p140
      %p142 = scmp.ne.s32.totalorder %s131, %s134
      %p143 = scmp.eq.s32.totalorder %s16, 1
      %p144 = por %p142, %p143
      %p145 = scmp.ne.s32.totalorder %s134, %s135
      %p146 = scmp.eq.s32.totalorder %s16, 0
      %p147 = por %p145, %p146
      %p148 = scmp.ne.s32.totalorder %s134, %s135
      %p149 = scmp.eq.s32.totalorder %s17, 1
      %p150 = por %p148, %p149
      %p152 = scmp.ne.s32.totalorder %s135, %s151
      %p153 = scmp.eq.s32.totalorder %s17, 0
      %p154 = por %p152, %p153
      %p155 = scmp.le.s32.totalorder 1, %s11
      %p156 = scmp.lt.s32.totalorder %s11, 3
      %p157 = pnand %p155, %p156
      %p158 = pneg %p157
      // Predicated region
      $region9: #{fire_forward.1} parent=5 // pred_check
        _
      $region10: #{fire_forward.1} parent=5 // pred_check_branch
        %160 = sbr.rel (%p157) target = $region12
      $region11: #{fire_forward.1} parent=5 // pred_region
        %s161 = ssub.s32 %s11, 1
        // Predicated region
        $region13: #{fire_forward.1} parent=11 // pred_check
          %p162 = pneg %p58
        $region14: #{fire_forward.1} parent=11 // pred_check_branch
          %164 = sbr.rel (%p162) target = $region16
        $region15: #{fire_forward.1} parent=11 // pred_region
          _
        $region16: #{fire_forward.1} parent=11 // pred_fallthru
          _
        // Predicated region
        $region17: #{fire_forward.1} parent=11 // pred_check
          %p165 = pneg %p79
        $region18: #{fire_forward.1} parent=11 // pred_check_branch
          %167 = sbr.rel (%p165) target = $region20
        $region19: #{fire_forward.1} parent=11 // pred_region
          _
        $region20: #{fire_forward.1} parent=11 // pred_fallthru
          _
        // Predicated region
        $region21: #{fire_forward.1} parent=11 // pred_check
          %p168 = pneg %p100
        $region22: #{fire_forward.1} parent=11 // pred_check_branch
          %170 = sbr.rel (%p168) target = $region24
        $region23: #{fire_forward.1} parent=11 // pred_region
          _
        $region24: #{fire_forward.1} parent=11 // pred_fallthru
          _
        // Predicated region
        $region25: #{fire_forward.1} parent=11 // pred_check
          %p171 = pneg %p121
        $region26: #{fire_forward.1} parent=11 // pred_check_branch
          %173 = sbr.rel (%p171) target = $region28
        $region27: #{fire_forward.1} parent=11 // pred_region
          _
        $region28: #{fire_forward.1} parent=11 // pred_fallthru
          _
      $region12: #{fire_forward.1} parent=5 // pred_fallthru
        _
      %p174 = scmp.lt.s32.totalorder %s11, 2
      // Predicated region
      $region29: #{fire_forward.1} parent=5 // pred_check
        %p175 = pneg %p174
      $region30: #{fire_forward.1} parent=5 // pred_check_branch
        %177 = sbr.rel (%p175) target = $region32
      $region31: #{fire_forward.1} parent=5 // pred_region
        // Predicated region
        $region33: #{fire_forward.1} parent=31 // pred_check
          %p178 = pneg %p31
        $region34: #{fire_forward.1} parent=31 // pred_check_branch
          %180 = sbr.rel (%p178) target = $region36
        $region35: #{fire_forward.1} parent=31 // pred_region
          %s181 = smul.u32 2, %s11
          %p182 = scmp.lt.s32.totalorder %s181, 3
          %s183 = scalar_select %p182, %s181, 3
          %s184 = smul.addr %s183, 4
          %s185 = scalar_lea.vmem %s0, %s184
          %s186 = smul.u32 2, %s11
        $region36: #{fire_forward.1} parent=31 // pred_fallthru
          _
      $region32: #{fire_forward.1} parent=5 // pred_fallthru
        _
      %p187 = scmp.le.s32.totalorder 1, %s11
      %p188 = scmp.lt.s32.totalorder %s11, 3
      %p189 = pnand %p187, %p188
      %p190 = pneg %p189
      // Predicated region
      $region37: #{fire_forward.1} parent=5 // pred_check
        _
      $region38: #{fire_forward.1} parent=5 // pred_check_branch
        %192 = sbr.rel (%p189) target = $region40
      $region39: #{fire_forward.1} parent=5 // pred_region
        %s193 = ssub.s32 %s11, 1
        %s194 = smul.u32 2, %s16
        %p195 = scmp.lt.s32.totalorder %s194, 3
        %s196 = scalar_select %p195, %s194, 3
        %s197 = smul.addr %s196, 4
        %s198 = scalar_lea.vmem %s0, %s197
        %p199 = pneg %p37
        %p200 = pneg %p34
        %p201 = pneg %p58
        %p202 = pneg %p55
        %p203 = pneg %p79
        %p204 = pneg %p76
        %p205 = pneg %p100
        %p206 = pneg %p97
        %p207 = pneg %p121
        %p208 = pneg %p118
        %p209 = pneg %p147
        %p210 = pneg %p144
        %s211 = sand.u32 %s134, 1
        %s212 = sand.u32 %s134, 1
        %s213 = smul.addr %s212, 32
        %s214 = scalar_lea.vmem [#allocation3], %s213
        %s215 = smul.u32 2, %s16
        %p216 = scmp.lt.s32.totalorder %s215, 3
        %s217 = scalar_select %p216, %s215, 3
        %s218 = smul.addr %s217, 4
        %s219 = scalar_lea.vmem %s0, %s218
        %s220 = smul.u32 2, %s16
        %s221 = smul.u32 2, %s16
        %v222 = vld [vmem:[%s1] sm:$0xff]
        %v223 = vld [vmem:[%s219] sm:$0xff]
        %v224 = vld [vmem:[%s2] sm:$0xff]
        %226 = vset.pattern.permute.xlu0 0
        %227 = vperm.xlu0 %226, %v224
        %v228 = vpop.permute.xlu0 %227
        %v231 = vcombine.high %v223, %v223
        %vm232 = vcmask 31744
        %v234 = vsel %vm232, %v222, 0
        %vm236 = vcmask 1043456
        %v237 = vsel %vm236, %v223, 0
        %v239 = vsel %vm236, %v231, 0
        %241 = vmatprep.subr.mxu0 0.0
        %242 = vmatpush1.msra.mxu0 0.0
        %243 = vmatprep.subr.mxu0 0.0
        %244 = vmatpush1.msra.mxu0 0.0
        %245 = vmatprep.subr.mxu0 0.0
        %246 = vmatpush1.msra.mxu0 0.0
        %247 = vmatprep.subr.mxu0 0.0
        %248 = vmatpush1.msra.mxu0 0.0
        %249 = vmatprep.subr.mxu0 0.0
        %250 = vmatpush1.msra.mxu0 0.0
        %251 = vmatprep.subr.mxu0 0.0
        %252 = vmatpush1.msra.mxu0 0.0
        %253 = vmatprep.subr.mxu0 0.0
        %254 = vmatpush1.msra.mxu0 0.0
        %255 = vmatprep.subr.mxu0 0.0
        %256 = vmatpush1.msra.mxu0 0.0
        %257 = vmatprep.subr.mxu0 0.0
        %258 = vmatpush1.msra.mxu0 0.0
        %259 = vmatprep.subr.mxu0 0.0
        %260 = vmatpush1.msra.mxu0 0.0
        %261 = vmatprep.subr.mxu0 0.0
        %262 = vmatpush1.msra.mxu0 0.0
        %263 = vmatprep.subr.mxu0 0.0
        %264 = vmatpush1.msra.mxu0 0.0
        %265 = vmatprep.subr.mxu0 0.0
        %266 = vmatpush1.msra.mxu0 0.0
        %267 = vmatprep.subr.mxu0 0.0
        %268 = vmatpush1.msra.mxu0 0.0
        %269 = vmatprep.subr.mxu0 0.0
        %270 = vmatpush1.msra.mxu0 0.0
        %271 = vmatprep.subr.mxu0 %v239
        %272 = vmatpush1.msra.mxu0 %v237
        %273 = vmatprep.subr.mxu0 0.0
        %274 = vmatpush2.msra.mxu0 0.0
        %275 = vmatprep.subr.mxu0 0.0
        %276 = vmatpush2.msra.mxu0 0.0
        %277 = vmatprep.subr.mxu0 0.0
        %278 = vmatpush2.msra.mxu0 0.0
        %279 = vmatprep.subr.mxu0 0.0
        %280 = vmatpush2.msra.mxu0 0.0
        %281 = vmatprep.subr.mxu0 0.0
        %282 = vmatpush2.msra.mxu0 0.0
        %283 = vmatprep.subr.mxu0 0.0
        %284 = vmatpush2.msra.mxu0 0.0
        %285 = vmatprep.subr.mxu0 0.0
        %286 = vmatpush2.msra.mxu0 0.0
        %287 = vmatprep.subr.mxu0 0.0
        %288 = vmatpush2.msra.mxu0 0.0
        %289 = vmatprep.subr.mxu0 0.0
        %290 = vmatpush2.msra.mxu0 0.0
        %291 = vmatprep.subr.mxu0 0.0
        %292 = vmatpush2.msra.mxu0 0.0
        %293 = vmatprep.subr.mxu0 0.0
        %294 = vmatpush2.msra.mxu0 0.0
        %295 = vmatprep.subr.mxu0 0.0
        %296 = vmatpush2.msra.mxu0 0.0
        %297 = vmatprep.subr.mxu0 0.0
        %298 = vmatpush2.msra.mxu0 0.0
        %299 = vmatprep.subr.mxu0 0.0
        %300 = vmatpush2.msra.mxu0 0.0
        %301 = vmatprep.subr.mxu0 0.0
        %302 = vmatpush2.msra.mxu0 0.0
        %303 = vmatprep.subr.mxu0 0.0
        %304 = vmatpush2.msra.mxu0 0.0
        %305 = vmatprep.mubr.f32.mxu0 0.0
        %306 = vmatmul.mubr.f32.gmra.mxu0 %v234
        %v307 = vpop.f32.mrf.mxu0
        %v308 = vadd.f32 %v228, %v307
        %v309 = vpop.f32.mrf.mxu0
        %v310 = vadd.f32 %v228, %v309
        %311 = vdwg.mxu0
        %v312 = vmax.f32 %v308, 0.0
        %v313 = vmax.f32 %v310, 0.0
        %314 = vrot.lane.b32.xlu0 %v312, 17
        %v315 = vpop.permute.xlu0 %314
        %316 = vrot.lane.b32.xlu0 %v313, 17
        %v317 = vpop.permute.xlu0 %316
        %v318 = vlaneseq
        %v319 = vand.u32 %v318, 127
        %vm320 = vcmp.lt.s32.totalorder %v319, 17
        %v321 = vsel %vm320, %v315, %v317
        %v322 = vsel %vm320, %v317, %v315
        %v323 = vld [vmem:[%s4] ss:$8 sm:$0x3]
        %v325 = vlaneseq
        %v326 = vshrl.u32 %v325, 7
        %v327 = vsub.s32 0, %v326
        %v328 = vrot.slane %v323, %v327
        %v329 = vlaneseq
        %v330 = vshrl.u32 %v329, 7
        %v331 = vsub.s32 1, %v330
        %v332 = vrot.slane %v323, %v331
        %v335 = vmul.f32 %v322, %v328
        %v336 = vmul.f32 %v321, %v332
        %337 = vst [vmem:[#allocation2] sm:$0xff] %v335
        %338 = vst [vmem:[#allocation2 + $0x8] sm:$0xff] %v336
        %339 = vrot.lane.b32.xlu0 %v312, 16
        %v340 = vpop.permute.xlu0 %339
        %341 = vrot.lane.b32.xlu0 %v313, 16
        %v342 = vpop.permute.xlu0 %341
        %vm343 = vcmp.lt.s32.totalorder %v319, 16
        %v344 = vsel %vm343, %v340, %v342
        %v345 = vsel %vm343, %v342, %v340
        %s346 = scalar_lea.vmem %s4, 1
        %v347 = vld [vmem:[%s346] ss:$8 sm:$0x3]
        %v349 = vlaneseq
        %v350 = vshrl.u32 %v349, 7
        %v351 = vsub.s32 0, %v350
        %v352 = vrot.slane %v347, %v351
        %v353 = vlaneseq
        %v354 = vshrl.u32 %v353, 7
        %v355 = vsub.s32 1, %v354
        %v356 = vrot.slane %v347, %v355
        %v359 = vmul.f32 %v345, %v352
        %v360 = vmul.f32 %v344, %v356
        %361 = vst [vmem:[#allocation2 + $0x10] sm:$0xff] %v359
        %362 = vst [vmem:[#allocation2 + $0x18] sm:$0xff] %v360
        %363 = vrot.lane.b32.xlu0 %v312, 15
        %v364 = vpop.permute.xlu0 %363
        %365 = vrot.lane.b32.xlu0 %v313, 15
        %v366 = vpop.permute.xlu0 %365
        %vm367 = vcmp.lt.s32.totalorder %v319, 15
        %v368 = vsel %vm367, %v364, %v366
        %v369 = vsel %vm367, %v366, %v364
        %s370 = scalar_lea.vmem %s4, 2
        %v371 = vld [vmem:[%s370] ss:$8 sm:$0x3]
        %v373 = vlaneseq
        %v374 = vshrl.u32 %v373, 7
        %v375 = vsub.s32 0, %v374
        %v376 = vrot.slane %v371, %v375
        %v377 = vlaneseq
        %v378 = vshrl.u32 %v377, 7
        %v379 = vsub.s32 1, %v378
        %v380 = vrot.slane %v371, %v379
        %v383 = vmul.f32 %v369, %v376
        %v384 = vmul.f32 %v368, %v380
        %385 = vst [vmem:[#allocation2 + $0x20] sm:$0xff] %v383
        %386 = vst [vmem:[#allocation2 + $0x28] sm:$0xff] %v384
        %387 = vrot.lane.b32.xlu0 %v312, 1
        %v388 = vpop.permute.xlu0 %387
        %389 = vrot.lane.b32.xlu0 %v313, 1
        %v390 = vpop.permute.xlu0 %389
        %vm391 = vcmp.lt.s32.totalorder %v319, 1
        %v392 = vsel %vm391, %v388, %v390
        %v393 = vsel %vm391, %v390, %v388
        %s394 = scalar_lea.vmem %s4, 3
        %v395 = vld [vmem:[%s394] ss:$8 sm:$0x3]
        %v397 = vlaneseq
        %v398 = vshrl.u32 %v397, 7
        %v399 = vsub.s32 0, %v398
        %v400 = vrot.slane %v395, %v399
        %v401 = vlaneseq
        %v402 = vshrl.u32 %v401, 7
        %v403 = vsub.s32 1, %v402
        %v404 = vrot.slane %v395, %v403
        %v407 = vmul.f32 %v393, %v400
        %v408 = vmul.f32 %v392, %v404
        %409 = vst [vmem:[#allocation2 + $0x30] sm:$0xff] %v407
        %410 = vst [vmem:[#allocation2 + $0x38] sm:$0xff] %v408
        %411 = vst [vmem:[#allocation2 + $0x40] sm:$0xff] %v312
        %412 = vst [vmem:[#allocation2 + $0x48] sm:$0xff] %v313
        %413 = vrot.lane.b32.xlu0 %v312, 127
        %v414 = vpop.permute.xlu0 %413
        %415 = vrot.lane.b32.xlu0 %v313, 127
        %v416 = vpop.permute.xlu0 %415
        %vm417 = vcmp.lt.s32.totalorder %v319, 127
        %v418 = vsel %vm417, %v414, %v416
        %v419 = vsel %vm417, %v416, %v414
        %s420 = scalar_lea.vmem %s4, 5
        %v421 = vld [vmem:[%s420] ss:$8 sm:$0x3]
        %v423 = vlaneseq
        %v424 = vshrl.u32 %v423, 7
        %v425 = vsub.s32 0, %v424
        %v426 = vrot.slane %v421, %v425
        %v427 = vlaneseq
        %v428 = vshrl.u32 %v427, 7
        %v429 = vsub.s32 1, %v428
        %v430 = vrot.slane %v421, %v429
        %v433 = vmul.f32 %v418, %v426
        %v434 = vmul.f32 %v419, %v430
        %435 = vst [vmem:[#allocation2 + $0x50] sm:$0xff] %v433
        %436 = vst [vmem:[#allocation2 + $0x58] sm:$0xff] %v434
        %437 = vrot.lane.b32.xlu0 %v312, 113
        %v438 = vpop.permute.xlu0 %437
        %439 = vrot.lane.b32.xlu0 %v313, 113
        %v440 = vpop.permute.xlu0 %439
        %vm441 = vcmp.lt.s32.totalorder %v319, 113
        %v442 = vsel %vm441, %v438, %v440
        %v443 = vsel %vm441, %v440, %v438
        %s444 = scalar_lea.vmem %s4, 6
        %v445 = vld [vmem:[%s444] ss:$8 sm:$0x3]
        %v447 = vlaneseq
        %v448 = vshrl.u32 %v447, 7
        %v449 = vsub.s32 0, %v448
        %v450 = vrot.slane %v445, %v449
        %v451 = vlaneseq
        %v452 = vshrl.u32 %v451, 7
        %v453 = vsub.s32 1, %v452
        %v454 = vrot.slane %v445, %v453
        %v457 = vmul.f32 %v442, %v450
        %v458 = vmul.f32 %v443, %v454
        %459 = vst [vmem:[#allocation2 + $0x60] sm:$0xff] %v457
        %460 = vst [vmem:[#allocation2 + $0x68] sm:$0xff] %v458
        %461 = vrot.lane.b32.xlu0 %v312, 112
        %v462 = vpop.permute.xlu0 %461
        %463 = vrot.lane.b32.xlu0 %v313, 112
        %v464 = vpop.permute.xlu0 %463
        %vm465 = vcmp.lt.s32.totalorder %v319, 112
        %v466 = vsel %vm465, %v462, %v464
        %v467 = vsel %vm465, %v464, %v462
        %s468 = scalar_lea.vmem %s4, 7
        %v469 = vld [vmem:[%s468] ss:$8 sm:$0x3]
        %v471 = vlaneseq
        %v472 = vshrl.u32 %v471, 7
        %v473 = vsub.s32 0, %v472
        %v474 = vrot.slane %v469, %v473
        %v475 = vlaneseq
        %v476 = vshrl.u32 %v475, 7
        %v477 = vsub.s32 1, %v476
        %v478 = vrot.slane %v469, %v477
        %v481 = vmul.f32 %v466, %v474
        %v482 = vmul.f32 %v467, %v478
        %483 = vst [vmem:[#allocation2 + $0x70] sm:$0xff] %v481
        %484 = vst [vmem:[#allocation2 + $0x78] sm:$0xff] %v482
        %485 = vrot.lane.b32.xlu0 %v312, 111
        %v486 = vpop.permute.xlu0 %485
        %487 = vrot.lane.b32.xlu0 %v313, 111
        %v488 = vpop.permute.xlu0 %487
        %vm489 = vcmp.lt.s32.totalorder %v319, 111
        %v490 = vsel %vm489, %v486, %v488
        %v491 = vsel %vm489, %v488, %v486
        %s492 = scalar_lea.vmem %s4, 16
        %v493 = vld [vmem:[%s492] ss:$8 sm:$0x3]
        %v495 = vlaneseq
        %v496 = vshrl.u32 %v495, 7
        %v497 = vsub.s32 0, %v496
        %v498 = vrot.slane %v493, %v497
        %v499 = vlaneseq
        %v500 = vshrl.u32 %v499, 7
        %v501 = vsub.s32 1, %v500
        %v502 = vrot.slane %v493, %v501
        %v505 = vmul.f32 %v490, %v498
        %v506 = vmul.f32 %v491, %v502
        %507 = vst [vmem:[#allocation2 + $0x80] sm:$0xff] %v505
        %508 = vst [vmem:[#allocation2 + $0x88] sm:$0xff] %v506
        %v509 = vlaneseq
        %vm510 = vcmp.ge.s32.totalorder %v509, 0
        %vm511 = vcmp.lt.s32.totalorder %v509, 256
        %vm512 = vmand %vm510, %vm511
        %s513 = scalar_lea.vmem [#allocation2], 144
        %514 = vst.msk [vmem:[%s513] ss:$8 sm:$0x3] %vm512, 1.0
        %515 = vst.msk [vmem:[%s513] ss:$8 sm:$0x0] %vm512, 1.0
        %v516 = vld [vmem:[%s3] sm:$0xff]
        %v517 = vld [vmem:[%s3 + $0x8] sm:$0xff]
        %v518 = vld [vmem:[#allocation2] sm:$0xff]
        %v519 = vld [vmem:[#allocation2 + $0x8] sm:$0xff]
        %v520 = vld [vmem:[#allocation2 + $0x10] sm:$0xff]
        %v521 = vld [vmem:[#allocation2 + $0x18] sm:$0xff]
        %v522 = vld [vmem:[#allocation2 + $0x20] sm:$0xff]
        %v523 = vld [vmem:[#allocation2 + $0x28] sm:$0xff]
        %v524 = vld [vmem:[#allocation2 + $0x30] sm:$0xff]
        %v525 = vld [vmem:[#allocation2 + $0x38] sm:$0xff]
        %v526 = vld [vmem:[#allocation2 + $0x40] sm:$0xff]
        %v527 = vld [vmem:[#allocation2 + $0x48] sm:$0xff]
        %v528 = vld [vmem:[#allocation2 + $0x50] sm:$0xff]
        %v529 = vld [vmem:[#allocation2 + $0x58] sm:$0xff]
        %v530 = vld [vmem:[#allocation2 + $0x60] sm:$0xff]
        %v531 = vld [vmem:[#allocation2 + $0x68] sm:$0xff]
        %v532 = vld [vmem:[#allocation2 + $0x70] sm:$0xff]
        %v533 = vld [vmem:[#allocation2 + $0x78] sm:$0xff]
        %v534 = vld [vmem:[#allocation2 + $0x80] sm:$0xff]
        %v535 = vld [vmem:[#allocation2 + $0x88] sm:$0xff]
        %v536 = vld [vmem:[#allocation2 + $0x90] sm:$0x1]
        %v537 = vld [vmem:[#allocation2 + $0x98] sm:$0x1]
        %vm538 = vcmask 596992
        %v540 = vsel %vm538, %v516, 0
        %v543 = vsel %vm538, %v517, 0
        %vm545 = vcmask 1040384
        %v547 = vsel %vm545, %v536, 0
        %v550 = vsel %vm545, %v537, 0
        %552 = vmatprep.subr.mxu0 0.0
        %553 = vmatpush1.msra.mxu0 0.0
        %554 = vmatprep.subr.mxu0 0.0
        %555 = vmatpush1.msra.mxu0 0.0
        %556 = vmatprep.subr.mxu0 0.0
        %557 = vmatpush1.msra.mxu0 0.0
        %558 = vmatprep.subr.mxu0 0.0
        %559 = vmatpush1.msra.mxu0 0.0
        %560 = vmatprep.subr.mxu0 0.0
        %561 = vmatpush1.msra.mxu0 0.0
        %562 = vmatprep.subr.mxu0 0.0
        %563 = vmatpush1.msra.mxu0 0.0
        %564 = vmatprep.subr.mxu0 %v550
        %565 = vmatpush1.msra.mxu0 %v547
        %566 = vmatprep.subr.mxu0 %v535
        %567 = vmatpush1.msra.mxu0 %v534
        %568 = vmatprep.subr.mxu0 %v533
        %569 = vmatpush1.msra.mxu0 %v532
        %570 = vmatprep.subr.mxu0 %v531
        %571 = vmatpush1.msra.mxu0 %v530
        %572 = vmatprep.subr.mxu0 %v529
        %573 = vmatpush1.msra.mxu0 %v528
        %574 = vmatprep.subr.mxu0 %v527
        %575 = vmatpush1.msra.mxu0 %v526
        %576 = vmatprep.subr.mxu0 %v525
        %577 = vmatpush1.msra.mxu0 %v524
        %578 = vmatprep.subr.mxu0 %v523
        %579 = vmatpush1.msra.mxu0 %v522
        %580 = vmatprep.subr.mxu0 %v521
        %581 = vmatpush1.msra.mxu0 %v520
        %582 = vmatprep.subr.mxu0 %v519
        %583 = vmatpush1.msra.mxu0 %v518
        %584 = vmatprep.subr.mxu0 0.0
        %585 = vmatpush2.msra.mxu0 0.0
        %586 = vmatprep.subr.mxu0 0.0
        %587 = vmatpush2.msra.mxu0 0.0
        %588 = vmatprep.subr.mxu0 0.0
        %589 = vmatpush2.msra.mxu0 0.0
        %590 = vmatprep.subr.mxu0 0.0
        %591 = vmatpush2.msra.mxu0 0.0
        %592 = vmatprep.subr.mxu0 0.0
        %593 = vmatpush2.msra.mxu0 0.0
        %594 = vmatprep.subr.mxu0 0.0
        %595 = vmatpush2.msra.mxu0 0.0
        %596 = vmatprep.subr.mxu0 0.0
        %597 = vmatpush2.msra.mxu0 0.0
        %598 = vmatprep.subr.mxu0 0.0
        %599 = vmatpush2.msra.mxu0 0.0
        %600 = vmatprep.subr.mxu0 0.0
        %601 = vmatpush2.msra.mxu0 0.0
        %602 = vmatprep.subr.mxu0 0.0
        %603 = vmatpush2.msra.mxu0 0.0
        %604 = vmatprep.subr.mxu0 0.0
        %605 = vmatpush2.msra.mxu0 0.0
        %606 = vmatprep.subr.mxu0 0.0
        %607 = vmatpush2.msra.mxu0 0.0
        %608 = vmatprep.subr.mxu0 0.0
        %609 = vmatpush2.msra.mxu0 0.0
        %610 = vmatprep.subr.mxu0 0.0
        %611 = vmatpush2.msra.mxu0 0.0
        %612 = vmatprep.subr.mxu0 0.0
        %613 = vmatpush2.msra.mxu0 0.0
        %614 = vmatprep.subr.mxu0 0.0
        %615 = vmatpush2.msra.mxu0 0.0
        %616 = vmatprep.mubr.f32.mxu0 0.0
        %617 = vmatmul.mubr.f32.gmra.mxu0 %v540
        %v618 = vpop.f32.mrf.mxu0
        %v619 = vadd.f32 0.0, %v618
        %v620 = vpop.f32.mrf.mxu0
        %v621 = vadd.f32 0.0, %v620
        %622 = vmatprep.mubr.f32.mxu0 0.0
        %623 = vmatmul.mubr.f32.gmra.mxu0 %v543
        %v624 = vpop.f32.mrf.mxu0
        %v625 = vadd.f32 0.0, %v624
        %v626 = vpop.f32.mrf.mxu0
        %v627 = vadd.f32 0.0, %v626
        %628 = vdwg.mxu0
        %v629 = vmax.f32 %v619, 0.0
        %v630 = vmax.f32 %v621, 0.0
        %v631 = vmax.f32 %v625, 0.0
        %v632 = vmax.f32 %v627, 0.0
        %633 = vst [vmem:[%s214] sm:$0xff] %v629
        %634 = vst [vmem:[%s214 + $0x8] sm:$0xff] %v630
        %635 = vst [vmem:[%s214 + $0x10] sm:$0xff] %v631
        %636 = vst [vmem:[%s214 + $0x18] sm:$0xff] %v632
        %s637 = sand.u32 %s134, 1
        %s638 = sand.u32 %s134, 1
        %s639 = smul.addr %s638, 32
        %s640 = scalar_lea.vmem [#allocation3], %s639
        // Predicated region
        $region41: #{fire_forward.1} parent=39 // pred_check
          %p641 = pneg %p144
        $region42: #{fire_forward.1} parent=39 // pred_check_branch
          %643 = sbr.rel (%p641) target = $region44
        $region43: #{fire_forward.1} parent=39 // pred_region
          %s644 = smul.u32 2, %s16
          %s645 = smul.addr %s644, 8
          %s646 = scalar_lea.vmem %s5, %s645
          // Predicated region
          $region45: #{fire_forward.1} parent=43 // pred_check
            _
          $region46: #{fire_forward.1} parent=43 // pred_check_branch
            %648 = sbr.rel (0) target = $region48
          $region47: #{fire_forward.1} parent=43 // pred_region
            // Predicated region
            $region49: #{fire_forward.1} parent=47 // pred_check
              _
            $region50: #{fire_forward.1} parent=47 // pred_check_branch
              %650 = sbr.rel (0) target = $region52
            $region51: #{fire_forward.1} parent=47 // pred_region
              loop: start=0, step=1, limit=1
              $region53: #{fire_forward.1} parent=51 // loop_pre_header
                _
              $region54: #{fire_forward.1} parent=51 // loop_header
                %s652 = sphi 0, %s656
                %p653 = scmp.ge.s32.totalorder %s652, 1
                %s657 = sphi %s640, %s640
                %s658 = sphi %s646, %s646
              $region55: #{fire_forward.1} parent=51 // loop_header_branch
                %655 = sbr.rel (%p653) target = $region59
              $region56: #{fire_forward.1} parent=51 // loop_body
                %v659 = vld [vmem:[%s657] sm:$0xff]
                %660 = vst [vmem:[%s658] sm:$0xff] %v659
                %v661 = vld [vmem:[%s657 + $0x8] sm:$0xff]
                %662 = vst [vmem:[%s658 + $0x8] sm:$0xff] %v661
                %v663 = vld [vmem:[%s657 + $0x10] sm:$0xff]
                %664 = vst [vmem:[%s658 + $0x20] sm:$0xff] %v663
                %v665 = vld [vmem:[%s657 + $0x18] sm:$0xff]
                %666 = vst [vmem:[%s658 + $0x28] sm:$0xff] %v665
              $region57: #{fire_forward.1} parent=51 // loop_footer
                %s656 = sadd.s32 1, %s652
              $region58: #{fire_forward.1} parent=51 // loop_footer_branch
                %651 = sbr.rel target = $region54
              $region59: #{fire_forward.1} parent=51 // loop_exit
                _
            $region52: #{fire_forward.1} parent=47 // pred_fallthru
              _
            // Predicated region
            $region60: #{fire_forward.1} parent=47 // pred_check
              _
            $region61: #{fire_forward.1} parent=47 // pred_check_branch
              %668 = sbr.rel target = $region63
            $region62: #{fire_forward.1} parent=47 // pred_region
              _
            $region63: #{fire_forward.1} parent=47 // pred_fallthru
              _
          $region48: #{fire_forward.1} parent=43 // pred_fallthru
            _
          %669 = vnop
        $region44: #{fire_forward.1} parent=39 // pred_fallthru
          _
      $region40: #{fire_forward.1} parent=5 // pred_fallthru
        _
      %p670 = scmp.le.s32.totalorder 2, %s11
      // Predicated region
      $region64: #{fire_forward.1} parent=5 // pred_check
        %p671 = pneg %p670
      $region65: #{fire_forward.1} parent=5 // pred_check_branch
        %673 = sbr.rel (%p671) target = $region67
      $region66: #{fire_forward.1} parent=5 // pred_region
        %s674 = ssub.s32 %s11, 2
        // Predicated region
        $region68: #{fire_forward.1} parent=66 // pred_check
          %p675 = pneg %p150
        $region69: #{fire_forward.1} parent=66 // pred_check_branch
          %677 = sbr.rel (%p675) target = $region71
        $region70: #{fire_forward.1} parent=66 // pred_region
          %s678 = sand.u32 %s135, 1
          %s679 = sand.u32 %s135, 1
          %s680 = smul.addr %s679, 32
          %s681 = scalar_lea.vmem [#allocation3], %s680
        $region71: #{fire_forward.1} parent=66 // pred_fallthru
          _
      $region67: #{fire_forward.1} parent=5 // pred_fallthru
        _
    $region6: #{fire_forward.1} parent=1 // loop_footer
      %s15 = sadd.s32 1, %s11
    $region7: #{fire_forward.1} parent=1 // loop_footer_branch
      %10 = sbr.rel target = $region3
    $region8: #{fire_forward.1} parent=1 // loop_exit
      _

</llo_original>
